<compile_context>
chip_gen: v7x
topology: tpu7x:2x2x1
jax: 0.10.0
libtpu: 0.0.40
codegen_flags: <defaults>
</compile_context>

<pallas_src>
import functools

import jax
import jax.numpy as jnp
from jax.experimental import pallas as pl
from jax.experimental.pallas import tpu as pltpu


_VMEM_LIMIT_BYTES = 48 * 1024 * 1024  # conservative across v5e/v6e (128 MiB) and v7x (64 MiB/TC)
_N_CHUNK_TEMPS_F32 = 6                # upper bound on live chunk-sized f32 temporaries


def _round_up(x, m):
    return -(-x // m) * m


def _pick_tiling(batch, num_classes, itemsize, *,
                 target_block_bytes=8 << 20,
                 target_chunk_bytes=1 << 20,
                 vmem_budget=_VMEM_LIMIT_BYTES):
    """Choose (block_rows, sub_rows).

    block_rows: rows per grid step (native-dtype HBM block, double-buffered).
    sub_rows:   rows per in-kernel fori_loop chunk (bounds f32 temporaries).
    """
    # Sub-32-bit dtypes pack along sublanes: f32 -> 8 rows, bf16 -> 16, int8/fp8 -> 32.
    row_align = 8 * max(1, 4 // int(itemsize))
    padded_b = _round_up(batch, row_align)
    # Cap tiles at ~half the batch so a 2-TC chip (v7x) gets >= 2 balanced blocks.
    half_b = max(row_align, _round_up(-(-padded_b // 2), row_align))

    # Sub-chunk rows: keep the per-chunk f32 working set ~target_chunk_bytes.
    sub_rows = target_chunk_bytes // max(1, num_classes * 4)
    sub_rows = max(row_align, (sub_rows // row_align) * row_align)
    sub_rows = min(sub_rows, 512, half_b)

    # Block rows: ~target_block_bytes per input block at the *native* dtype,
    # multiple of sub_rows, at most ~half the batch.
    rows = target_block_bytes // max(1, num_classes * itemsize)
    rows = max(sub_rows, (rows // sub_rows) * sub_rows)
    block_rows = min(rows, max(sub_rows, _round_up(half_b, sub_rows)))

    # Explicit VMEM budget: 2 inputs x 2 pipeline buffers (native dtype) plus
    # the chunk-sized f32 temporaries.  Shrink the block until it fits.
    def vmem_bytes(br):
        return (2 * 2 * br * num_classes * itemsize
                + _N_CHUNK_TEMPS_F32 * sub_rows * num_classes * 4)

    while block_rows > sub_rows and vmem_bytes(block_rows) > vmem_budget:
        block_rows -= sub_rows
    return block_rows, sub_rows


def _kd_loss_kernel(t_ref, s_ref, o_ref, *, inv_temp, block_rows, sub_rows,
                    total_rows, has_tail):
    i = pl.program_id(0)
    num_chunks = block_rows // sub_rows

    def chunk_row_loss(c, masked):
        start = pl.multiple_of(c * sub_rows, sub_rows)
        t = t_ref[pl.ds(start, sub_rows), :].astype(jnp.float32) * inv_temp
        s = s_ref[pl.ds(start, sub_rows), :].astype(jnp.float32) * inv_temp

        # Student log-softmax: only the per-row logsumexp is needed.
        s_max = jnp.max(s, axis=-1, keepdims=True)
        s_shift = s - s_max
        s_lse = jnp.log(jnp.sum(jnp.exp(s_shift), axis=-1, keepdims=True))

        # Teacher softmax pieces (unnormalized).
        t_max = jnp.max(t, axis=-1, keepdims=True)
        t_shift = t - t_max
        t_exp = jnp.exp(t_shift)
        t_sum = jnp.sum(t_exp, axis=-1, keepdims=True)

        # Per-row KL: cross / t_sum - log(t_sum) + s_lse
        # TODO(synk): if a bundle dump shows VALU/vld saturation (most likely
        # on v7x at 3.2 TB/s), offload the three lane-axis sums to the idle
        # MXU via jnp.dot with a (C, 128) ones matrix.
        cross = jnp.sum(t_exp * (t_shift - s_shift), axis=-1, keepdims=True)
        row_loss = cross / t_sum - jnp.log(t_sum) + s_lse  # (sub_rows, 1)

        if masked:
            # Select-THEN-accumulate: garbage/inf/NaN tail rows never reach
            # the sum.
            row_idx = (i * block_rows + start
                       + jax.lax.broadcasted_iota(jnp.int32, row_loss.shape, 0))
            row_loss = jnp.where(row_idx < total_rows, row_loss, 0.0)
        return row_loss

    def block_partial(masked):
        def body(c, acc):
            return acc + chunk_row_loss(c, masked)

        acc0 = jnp.zeros((sub_rows, 1), jnp.float32)
        acc = jax.lax.fori_loop(0, num_chunks, body, acc0,
                                unroll=(num_chunks <= 8))
        return jnp.sum(acc)

    def write(masked):
        # Lane/sublane-dense per-block partial; only [0, 0] is read back.
        o_ref[...] = jnp.full(o_ref.shape, block_partial(masked), jnp.float32)

    if has_tail:
        is_last = i == pl.num_programs(0) - 1

        @pl.when(is_last)
        def _():
            write(True)

        @pl.when(jnp.logical_not(is_last))
        def _():
            write(False)
    else:
        write(False)


def kd_loss(teacher_logits, student_logits, *, temp, reduction,
            block_rows=None, sub_rows=None):
    assert teacher_logits.shape == student_logits.shape
    B, C = teacher_logits.shape
    itemsize = teacher_logits.dtype.itemsize

    auto_block, auto_sub = _pick_tiling(B, C, itemsize)
    if block_rows is None:
        block_rows = auto_block
    if sub_rows is None:
        sub_rows = auto_sub if block_rows % auto_sub == 0 else block_rows
    sub_rows = min(sub_rows, block_rows)
    assert block_rows % sub_rows == 0, (block_rows, sub_rows)

    num_blocks = -(-B // block_rows)  # ceil div
    has_tail = (B % block_rows) != 0

    kernel = functools.partial(
        _kd_loss_kernel,
        inv_temp=1.0 / float(temp),
        block_rows=block_rows,
        sub_rows=sub_rows,
        total_rows=B,
        has_tail=has_tail,
    )

    partials = pl.pallas_call(
        kernel,
        out_shape=jax.ShapeDtypeStruct((num_blocks, 8, 128), jnp.float32),
        grid_spec=pltpu.PrefetchScalarGridSpec(
            num_scalar_prefetch=0,
            grid=(num_blocks,),
            in_specs=[
                pl.BlockSpec((block_rows, C), lambda i: (i, 0)),
                pl.BlockSpec((block_rows, C), lambda i: (i, 0)),
            ],
            out_specs=pl.BlockSpec((1, 8, 128), lambda i: (i, 0, 0)),
        ),
        compiler_params=pltpu.CompilerParams(
            dimension_semantics=("parallel",),  # independent blocks -> megacore OK
            vmem_limit_bytes=_VMEM_LIMIT_BYTES,
        ),
    )(teacher_logits, student_logits)

    total = jnp.sum(partials[:, 0, 0])
    if reduction != "sum":
        # kl.sum(1).mean() == (full sum) / B  (the module's non-'sum' path)
        total = total / B
    return total * (float(temp) ** 2)


def _kd_loss_ref(teacher_logits, student_logits, temp, reduction):
    log_q = jax.nn.log_softmax(student_logits / temp, axis=-1)
    p = jax.nn.softmax(teacher_logits / temp, axis=-1)
    kl = p * (jnp.log(p) - log_q)
    kl = jnp.sum(kl) if reduction == "sum" else jnp.mean(jnp.sum(kl, axis=1))
    return kl * temp ** 2


if __name__ == "__main__":
    key = jax.random.PRNGKey(0)
    k1, k2 = jax.random.split(key)

    B, C = 16, 128
    temp = 4.0

    teacher = jax.random.normal(k1, (B, C), dtype=jnp.float32) * 2.0
    student = jax.random.normal(k2, (B, C), dtype=jnp.float32) * 2.0

    ok = True
    for reduction in ("mean", "sum"):
        out = jax.block_until_ready(
            kd_loss(teacher, student, temp=temp, reduction=reduction))
        ref = _kd_loss_ref(teacher, student, temp, reduction)
        if not jnp.allclose(out, ref, rtol=1e-4, atol=1e-4):
            ok = False
            print(f"MISMATCH ({reduction}): kernel={out} ref={ref}")

    # Exercise the multi-block + multi-chunk + masked-tail path.
    k3, k4 = jax.random.split(jax.random.PRNGKey(1))
    B2, C2 = 45, 256
    teacher2 = jax.random.normal(k3, (B2, C2), dtype=jnp.float32) * 3.0
    student2 = jax.random.normal(k4, (B2, C2), dtype=jnp.float32) * 3.0
    out2 = jax.block_until_ready(
        kd_loss(teacher2, student2, temp=2.0, reduction="mean",
                block_rows=16, sub_rows=8))
    ref2 = _kd_loss_ref(teacher2, student2, 2.0, "mean")
    if not jnp.allclose(out2, ref2, rtol=1e-4, atol=1e-4):
        ok = False
        print(f"MISMATCH (tail): kernel={out2} ref={ref2}")

    if ok:
        print("KERNEL_OK")
</pallas_src>

<mosaic_0001>
module attributes {stable_mosaic.version = 11 : i64} {
  func.func @_kd_loss_kernel(%arg0: i32, %arg1: memref<8x128xf32, #tpu.memory_space<vmem>>, %arg2: memref<8x128xf32, #tpu.memory_space<vmem>>, %arg3: memref<1x8x128xf32, #tpu.memory_space<vmem>>) attributes {dimension_semantics = [#tpu.dimension_semantics<parallel>], iteration_bounds = array<i64: 2>, scalar_prefetch = 0 : i64, scratch_operands = 0 : i64, tpu.core_type = #tpu.core_type<tc>, window_params = [{transform_indices = @transform_0, window_bounds = array<i64: 8, 128>}, {transform_indices = @transform_1, window_bounds = array<i64: 8, 128>}, {transform_indices = @transform_2, window_bounds = array<i64: 1, 8, 128>}]} {
    %cst = arith.constant 0.000000e+00 : f32
    %0 = vector.broadcast %cst : f32 to vector<8x1xf32>
    %c0_i32 = arith.constant 0 : i32
    %c8_i32 = arith.constant 8 : i32
    %1 = arith.muli %c0_i32, %c8_i32 : i32
    %2 = tpu.assume_multiple %1, 8 : i32
    %3 = arith.index_cast %2 : i32 to index
    %c0 = arith.constant 0 : index
    %4 = vector.load %arg1[%3, %c0] : memref<8x128xf32, #tpu.memory_space<vmem>>, vector<8x128xf32>
    %cst_0 = arith.constant 2.500000e-01 : f32
    %5 = vector.broadcast %cst_0 : f32 to vector<8x128xf32>
    %6 = arith.mulf %4, %5 : vector<8x128xf32>
    %7 = arith.index_cast %2 : i32 to index
    %c0_1 = arith.constant 0 : index
    %8 = vector.load %arg2[%7, %c0_1] : memref<8x128xf32, #tpu.memory_space<vmem>>, vector<8x128xf32>
    %cst_2 = arith.constant 2.500000e-01 : f32
    %9 = vector.broadcast %cst_2 : f32 to vector<8x128xf32>
    %10 = arith.mulf %8, %9 : vector<8x128xf32>
    %cst_3 = arith.constant dense<0xFF800000> : vector<8xf32>
    %11 = vector.multi_reduction <maximumf>, %10, %cst_3 [1] : vector<8x128xf32> to vector<8xf32>
    %12 = vector.shape_cast %11 : vector<8xf32> to vector<8x1xf32>
    %13 = vector.broadcast %12 : vector<8x1xf32> to vector<8x128xf32>
    %14 = arith.subf %10, %13 : vector<8x128xf32>
    %15 = math.exp %14 : vector<8x128xf32>
    %cst_4 = arith.constant dense<0.000000e+00> : vector<8xf32>
    %16 = vector.multi_reduction <add>, %15, %cst_4 [1] : vector<8x128xf32> to vector<8xf32>
    %17 = vector.shape_cast %16 : vector<8xf32> to vector<8x1xf32>
    %18 = math.log %17 : vector<8x1xf32>
    %cst_5 = arith.constant dense<0xFF800000> : vector<8xf32>
    %19 = vector.multi_reduction <maximumf>, %6, %cst_5 [1] : vector<8x128xf32> to vector<8xf32>
    %20 = vector.shape_cast %19 : vector<8xf32> to vector<8x1xf32>
    %21 = vector.broadcast %20 : vector<8x1xf32> to vector<8x128xf32>
    %22 = arith.subf %6, %21 : vector<8x128xf32>
    %23 = math.exp %22 : vector<8x128xf32>
    %cst_6 = arith.constant dense<0.000000e+00> : vector<8xf32>
    %24 = vector.multi_reduction <add>, %23, %cst_6 [1] : vector<8x128xf32> to vector<8xf32>
    %25 = vector.shape_cast %24 : vector<8xf32> to vector<8x1xf32>
    %26 = arith.subf %22, %14 : vector<8x128xf32>
    %27 = arith.mulf %23, %26 : vector<8x128xf32>
    %cst_7 = arith.constant dense<0.000000e+00> : vector<8xf32>
    %28 = vector.multi_reduction <add>, %27, %cst_7 [1] : vector<8x128xf32> to vector<8xf32>
    %29 = vector.shape_cast %28 : vector<8xf32> to vector<8x1xf32>
    %30 = arith.divf %29, %25 : vector<8x1xf32>
    %31 = math.log %25 : vector<8x1xf32>
    %32 = arith.subf %30, %31 : vector<8x1xf32>
    %33 = arith.addf %32, %18 : vector<8x1xf32>
    %34 = arith.addf %0, %33 : vector<8x1xf32>
    %c1_i32 = arith.constant 1 : i32
    %35 = vector.shape_cast %34 : vector<8x1xf32> to vector<1x8x1xf32>
    %cst_8 = arith.constant dense<0.000000e+00> : vector<1xf32>
    %36 = vector.multi_reduction <add>, %35, %cst_8 [1, 2] : vector<1x8x1xf32> to vector<1xf32>
    %37 = vector.shape_cast %36 : vector<1xf32> to vector<1x1x1xf32>
    %38 = vector.extract %37[0, 0, 0] : f32 from vector<1x1x1xf32>
    %39 = vector.broadcast %38 : f32 to vector<1x8x128xf32>
    %c0_9 = arith.constant 0 : index
    %c0_10 = arith.constant 0 : index
    %c0_11 = arith.constant 0 : index
    %40 = vector.load %arg3[%c0_9, %c0_10, %c0_11] : memref<1x8x128xf32, #tpu.memory_space<vmem>>, vector<1x8x128xf32>
    tpu.vector_store %arg3[%c0_9, %c0_10, %c0_11], %39 {strides = array<i32>} : memref<1x8x128xf32, #tpu.memory_space<vmem>>, vector<1x8x128xf32>,
    return
  }
  func.func @transform_0(%arg0: i32) -> (i32, i32) {
    %c0_i32 = arith.constant 0 : i32
    %c0_i32_0 = arith.constant 0 : i32
    return %arg0, %c0_i32 : i32, i32
  }
  func.func @transform_1(%arg0: i32) -> (i32, i32) {
    %c0_i32 = arith.constant 0 : i32
    %c0_i32_0 = arith.constant 0 : i32
    return %arg0, %c0_i32 : i32, i32
  }
  func.func @transform_2(%arg0: i32) -> (i32, i32, i32) {
    %c0_i32 = arith.constant 0 : i32
    %c0_i32_0 = arith.constant 0 : i32
    %c0_i32_1 = arith.constant 0 : i32
    return %arg0, %c0_i32, %c0_i32_0 : i32, i32, i32
  }
}

</mosaic_0001>

<llo_original>
// kernel: tpu_custom_call.1
$region0: #{tpu_custom_call.1}
  #allocation0 [shape = 'u32[]', space=smem, size = 0x4, offset = 0x4, fixed_abs, tag = 'smem constant byte address 0x4 - core index']
  #allocation1 [shape = 'u32[144,128]{1,0:T(1,128)}', space=vmem, size = 0x12000, scoped, tag = 'internal scratch']
  %s0 = inlined_call_operand.hbm [shape: f32[16,128], index: 0, kind: input, shape index: {}]
  %s1 = inlined_call_operand.hbm [shape: f32[16,128], index: 1, kind: input, shape index: {}]
  %s2 = inlined_call_operand.hbm [shape: f32[2,8,128], index: 2, kind: output, shape index: {}]
  %s3 = sld [smem:[#allocation0]]
  $region49: #{tpu_custom_call.1} parent=0
    _
  %s5 = ssub.s32 1, %s3
  %s6 = scalar_select 0, %s5, %s3
  $region1: #{tpu_custom_call.1} parent=0
    #allocation2 [shape = 'u8[8192]{0}', space=vmem, size = 0x2000, scoped, tag = 'input window, operand 0']
    #allocation3 [shape = 's32[2]{0}', space=sflag, size = 0x8, scoped, tag = 'scoped memory for tpu_custom_call.1']
    #allocation4 [shape = 's32[2]{0}', space=sflag, size = 0x8, scoped, tag = 'scoped memory for tpu_custom_call.1']
    #allocation5 [shape = 'u8[8192]{0}', space=vmem, size = 0x2000, scoped, tag = 'input window, operand 1']
    #allocation6 [shape = 's32[2]{0}', space=sflag, size = 0x8, scoped, tag = 'scoped memory for tpu_custom_call.1']
    #allocation7 [shape = 'u8[8192]{0}', space=vmem, size = 0x2000, scoped, tag = 'output window, operand 0']
    %7 = vsyncpa [#allocation3], 0
    %s8 = scalar_lea.sflag [#allocation3], 1
    %9 = vsyncpa %s8, 0
    %10 = vsyncpa [#allocation6], 0
    %s11 = scalar_lea.sflag [#allocation6], 1
    %12 = vsyncpa %s11, 0
    %13 = vsyncpa [#allocation4], 0
    %s14 = scalar_lea.sflag [#allocation4], 1
    %15 = vsyncpa %s14, 0
    loop: start=0, step=1, limit=4
    $region2: #{tpu_custom_call.1} parent=1 // loop_pre_header
      _
    $region3: #{tpu_custom_call.1} parent=1 // loop_header
      %s17 = sphi 0, %s21
      %p18 = scmp.ge.s32.totalorder %s17, 4
      %s27 = sphi 0, %s29
      %s30 = sphi 0, %s27
      %s31 = sphi 0, %s30
      %s47 = sphi 0, %s31
      %s53 = sphi 0, %s55
      %s56 = sphi 0, %s53
      %s57 = sphi 0, %s56
      %s73 = sphi 0, %s57
      %s79 = sphi 0, %s81
      %s82 = sphi 0, %s79
      %s83 = sphi 0, %s82
      %s99 = sphi 0, %s83
    $region4: #{tpu_custom_call.1} parent=1 // loop_header_branch
      %20 = sbr.rel (%p18) target = $region8
    $region5: #{tpu_custom_call.1} parent=1 // loop_body
      %s22 = ssub.s32 %s17, 1
      %s23 = ssub.s32 %s17, 2
      %s24 = sadd.s32 %s17, 1
      %s25 = ssub.s32 %s17, %s24
      %p26 = scmp.eq.s32.totalorder %s25, 0
      %s28 = sadd.s32 %s27, 1
      %s29 = scalar_select %p26, %s27, %s28
      %p32 = pneg %p26
      %p33 = scmp.eq.s32.totalorder %s17, 1
      %p34 = por %p32, %p33
      %p35 = scmp.ne.s32.totalorder %s27, %s30
      %p36 = scmp.eq.s32.totalorder %s17, 0
      %p37 = por %p35, %p36
      %p38 = scmp.ne.s32.totalorder %s27, %s30
      %p39 = scmp.eq.s32.totalorder %s22, 1
      %p40 = por %p38, %p39
      %p41 = scmp.ne.s32.totalorder %s30, %s31
      %p42 = scmp.eq.s32.totalorder %s22, 0
      %p43 = por %p41, %p42
      %p44 = scmp.ne.s32.totalorder %s30, %s31
      %p45 = scmp.eq.s32.totalorder %s23, 1
      %p46 = por %p44, %p45
      %p48 = scmp.ne.s32.totalorder %s31, %s47
      %p49 = scmp.eq.s32.totalorder %s23, 0
      %p50 = por %p48, %p49
      %s51 = ssub.s32 %s17, %s24
      %p52 = scmp.eq.s32.totalorder %s51, 0
      %s54 = sadd.s32 %s53, 1
      %s55 = scalar_select %p52, %s53, %s54
      %p58 = pneg %p52
      %p59 = scmp.eq.s32.totalorder %s17, 1
      %p60 = por %p58, %p59
      %p61 = scmp.ne.s32.totalorder %s53, %s56
      %p62 = scmp.eq.s32.totalorder %s17, 0
      %p63 = por %p61, %p62
      %p64 = scmp.ne.s32.totalorder %s53, %s56
      %p65 = scmp.eq.s32.totalorder %s22, 1
      %p66 = por %p64, %p65
      %p67 = scmp.ne.s32.totalorder %s56, %s57
      %p68 = scmp.eq.s32.totalorder %s22, 0
      %p69 = por %p67, %p68
      %p70 = scmp.ne.s32.totalorder %s56, %s57
      %p71 = scmp.eq.s32.totalorder %s23, 1
      %p72 = por %p70, %p71
      %p74 = scmp.ne.s32.totalorder %s57, %s73
      %p75 = scmp.eq.s32.totalorder %s23, 0
      %p76 = por %p74, %p75
      %s77 = ssub.s32 %s17, %s24
      %p78 = scmp.eq.s32.totalorder %s77, 0
      %s80 = sadd.s32 %s79, 1
      %s81 = scalar_select %p78, %s79, %s80
      %p84 = pneg %p78
      %p85 = scmp.eq.s32.totalorder %s17, 1
      %p86 = por %p84, %p85
      %p87 = scmp.ne.s32.totalorder %s79, %s82
      %p88 = scmp.eq.s32.totalorder %s17, 0
      %p89 = por %p87, %p88
      %p90 = scmp.ne.s32.totalorder %s79, %s82
      %p91 = scmp.eq.s32.totalorder %s22, 1
      %p92 = por %p90, %p91
      %p93 = scmp.ne.s32.totalorder %s82, %s83
      %p94 = scmp.eq.s32.totalorder %s22, 0
      %p95 = por %p93, %p94
      %p96 = scmp.ne.s32.totalorder %s82, %s83
      %p97 = scmp.eq.s32.totalorder %s23, 1
      %p98 = por %p96, %p97
      %p100 = scmp.ne.s32.totalorder %s83, %s99
      %p101 = scmp.eq.s32.totalorder %s23, 0
      %p102 = por %p100, %p101
      %p103 = scmp.le.s32.totalorder 1, %s17
      %p104 = scmp.lt.s32.totalorder %s17, 3
      %p105 = pnand %p103, %p104
      %p106 = pneg %p105
      // Predicated region
      $region9: #{tpu_custom_call.1} parent=5 // pred_check
        _
      $region10: #{tpu_custom_call.1} parent=5 // pred_check_branch
        %108 = sbr.rel (%p105) target = $region12
      $region11: #{tpu_custom_call.1} parent=5 // pred_region
        %s109 = ssub.s32 %s17, 1
      $region12: #{tpu_custom_call.1} parent=5 // pred_fallthru
        _
      %p110 = scmp.lt.s32.totalorder %s17, 2
      // Predicated region
      $region13: #{tpu_custom_call.1} parent=5 // pred_check
        %p111 = pneg %p110
      $region14: #{tpu_custom_call.1} parent=5 // pred_check_branch
        %113 = sbr.rel (%p111) target = $region16
      $region15: #{tpu_custom_call.1} parent=5 // pred_region
        // Predicated region
        $region17: #{tpu_custom_call.1} parent=15 // pred_check
          %p114 = pneg %p37
        $region18: #{tpu_custom_call.1} parent=15 // pred_check_branch
          %116 = sbr.rel (%p114) target = $region20
        $region19: #{tpu_custom_call.1} parent=15 // pred_region
          %s117 = sand.u32 %s27, 1
          %s118 = scalar_lea.sflag [#allocation3], %s117
          %s119 = sand.u32 %s27, 1
          %s120 = smul.addr %s119, 8
          %s121 = scalar_lea.vmem [#allocation2], %s120
          %s123 = ssub.s32 128, 128
          %124 = vsyncadd %s118, %s123
          %s125 = smul.addr %s17, 128
          %s126 = scalar_lea.hbm %s0, %s125
          %s128 = sshll.u32 %s121, 4
          %s129 = int_to_ptr.vmem [resolvable:$true] %s128
          %131 = dma.hbm_to_vmem [thread:$0]  %s126, 128, %s129, %s118
        $region20: #{tpu_custom_call.1} parent=15 // pred_fallthru
          _
        // Predicated region
        $region21: #{tpu_custom_call.1} parent=15 // pred_check
          %p132 = pneg %p63
        $region22: #{tpu_custom_call.1} parent=15 // pred_check_branch
          %134 = sbr.rel (%p132) target = $region24
        $region23: #{tpu_custom_call.1} parent=15 // pred_region
          %s135 = sand.u32 %s53, 1
          %s136 = scalar_lea.sflag [#allocation6], %s135
          %s137 = sand.u32 %s53, 1
          %s138 = smul.addr %s137, 8
          %s139 = scalar_lea.vmem [#allocation5], %s138
          %s141 = ssub.s32 128, 128
          %142 = vsyncadd %s136, %s141
          %s143 = smul.addr %s17, 128
          %s144 = scalar_lea.hbm %s1, %s143
          %s146 = sshll.u32 %s139, 4
          %s147 = int_to_ptr.vmem [resolvable:$true] %s146
          %149 = dma.hbm_to_vmem [thread:$0]  %s144, 128, %s147, %s136
        $region24: #{tpu_custom_call.1} parent=15 // pred_fallthru
          _
      $region16: #{tpu_custom_call.1} parent=5 // pred_fallthru
        _
      %p150 = scmp.le.s32.totalorder 1, %s17
      %p151 = scmp.lt.s32.totalorder %s17, 3
      %p152 = pnand %p150, %p151
      %p153 = pneg %p152
      // Predicated region
      $region25: #{tpu_custom_call.1} parent=5 // pred_check
        _
      $region26: #{tpu_custom_call.1} parent=5 // pred_check_branch
        %155 = sbr.rel (%p152) target = $region28
      $region27: #{tpu_custom_call.1} parent=5 // pred_region
        %s156 = ssub.s32 %s17, 1
        %s157 = sand.u32 %s30, 1
        %s158 = scalar_lea.sflag [#allocation3], %s157
        %s159 = sand.u32 %s30, 1
        %s160 = smul.addr %s159, 8
        %s161 = scalar_lea.vmem [#allocation2], %s160
        // Predicated region
        $region29: #{tpu_custom_call.1} parent=27 // pred_check
          %p162 = pneg %p43
        $region30: #{tpu_custom_call.1} parent=27 // pred_check_branch
          %164 = sbr.rel (%p162) target = $region32
        $region31: #{tpu_custom_call.1} parent=27 // pred_region
          %165 = dma.done %s158, 128
        $region32: #{tpu_custom_call.1} parent=27 // pred_fallthru
          _
        %s166 = sand.u32 %s56, 1
        %s167 = scalar_lea.sflag [#allocation6], %s166
        %s168 = sand.u32 %s56, 1
        %s169 = smul.addr %s168, 8
        %s170 = scalar_lea.vmem [#allocation5], %s169
        // Predicated region
        $region33: #{tpu_custom_call.1} parent=27 // pred_check
          %p171 = pneg %p69
        $region34: #{tpu_custom_call.1} parent=27 // pred_check_branch
          %173 = sbr.rel (%p171) target = $region36
        $region35: #{tpu_custom_call.1} parent=27 // pred_region
          %174 = dma.done %s167, 128
        $region36: #{tpu_custom_call.1} parent=27 // pred_fallthru
          _
        %s175 = sand.u32 %s30, 1
        %s176 = scalar_lea.sflag [#allocation3], %s175
        %s177 = sand.u32 %s30, 1
        %s178 = smul.addr %s177, 8
        %s179 = scalar_lea.vmem [#allocation2], %s178
        %p180 = pneg %p43
        %p181 = pneg %p40
        %s182 = sand.u32 %s56, 1
        %s183 = scalar_lea.sflag [#allocation6], %s182
        %s184 = sand.u32 %s56, 1
        %s185 = smul.addr %s184, 8
        %s186 = scalar_lea.vmem [#allocation5], %s185
        %p187 = pneg %p69
        %p188 = pneg %p66
        %p189 = pneg %p95
        %p190 = pneg %p92
        %s191 = sand.u32 %s82, 1
        %s192 = scalar_lea.sflag [#allocation4], %s191
        %s193 = sand.u32 %s82, 1
        %s194 = smul.addr %s193, 8
        %s195 = scalar_lea.vmem [#allocation7], %s194
        %v196 = vld [vmem:[%s161] sm:$0xff]
        %v197 = vmul.f32 %v196, 0.25
        %v198 = vld [vmem:[%s170] sm:$0xff]
        %v199 = vmul.f32 %v198, 0.25
        %200 = vmax.xlane.f32.xlu0 %v199
        %v201 = vpop.xlane.xlu0 %200
        %v202 = vsub.f32 %v199, %v201
        %v203 = vmul.f32 %v202, 1.442695
        %v204 = vpow.pop %v203
        %205 = vadd.xlane.f32.xlu0 %v204
        %v206 = vpop.xlane.xlu0 %205
        %v207 = vlog2.pop %v206
        %v208 = vmul.f32 %v207, 0.6931472
        %209 = vmax.xlane.f32.xlu0 %v197
        %v210 = vpop.xlane.xlu0 %209
        %v211 = vsub.f32 %v197, %v210
        %v212 = vmul.f32 %v211, 1.442695
        %v213 = vpow.pop %v212
        %214 = vadd.xlane.f32.xlu0 %v213
        %v215 = vpop.xlane.xlu0 %214
        %v216 = vsub.f32 %v211, %v202
        %v217 = vmul.f32 %v213, %v216
        %218 = vadd.xlane.f32.xlu0 %v217
        %v219 = vpop.xlane.xlu0 %218
        %v220 = vrcp.pop %v215
        %v221 = vmul.f32 %v219, %v220
        %v222 = vlog2.pop %v215
        %v223 = vmul.f32 %v222, 0.6931472
        %v224 = vsub.f32 %v221, %v223
        %v225 = vadd.f32 %v224, %v208
        %v226 = vadd.f32 %v225, 0.0
        %vm227 = vcmask 7168
        %v228 = vsel %vm227, %v226, 0.0
        %229 = vadd.xlane.f32.xlu0 %v228
        %v230 = vpop.xlane.xlu0 %229
        %v231 = vrot.slane %v230, 4
        %v232 = vadd.f32 %v230, %v231
        %v233 = vrot.slane %v232, 2
        %v234 = vadd.f32 %v232, %v233
        %v235 = vrot.slane %v234, 1
        %v236 = vadd.f32 %v234, %v235
        %s237 = vtos %v236
        %v238 = vstv %s237
        %239 = vst [vmem:[%s195] sm:$0xff] %v238
        %s240 = sand.u32 %s82, 1
        %s241 = scalar_lea.sflag [#allocation4], %s240
        %s242 = sand.u32 %s82, 1
        %s243 = smul.addr %s242, 8
        %s244 = scalar_lea.vmem [#allocation7], %s243
        // Predicated region
        $region37: #{tpu_custom_call.1} parent=27 // pred_check
          %p245 = pneg %p92
        $region38: #{tpu_custom_call.1} parent=27 // pred_check_branch
          %247 = sbr.rel (%p245) target = $region40
        $region39: #{tpu_custom_call.1} parent=27 // pred_region
          %s249 = ssub.s32 128, 128
          %250 = vsyncadd %s241, %s249
          %s251 = smul.addr %s22, 128
          %s252 = scalar_lea.hbm %s2, %s251
          %s254 = sshll.u32 %s244, 4
          %s255 = int_to_ptr.vmem [resolvable:$true] %s254
          %257 = dma.vmem_to_hbm [thread:$0]  %s255, 128, %s252, %s241
        $region40: #{tpu_custom_call.1} parent=27 // pred_fallthru
          _
      $region28: #{tpu_custom_call.1} parent=5 // pred_fallthru
        _
      %p258 = scmp.le.s32.totalorder 2, %s17
      // Predicated region
      $region41: #{tpu_custom_call.1} parent=5 // pred_check
        %p259 = pneg %p258
      $region42: #{tpu_custom_call.1} parent=5 // pred_check_branch
        %261 = sbr.rel (%p259) target = $region44
      $region43: #{tpu_custom_call.1} parent=5 // pred_region
        %s262 = ssub.s32 %s17, 2
        // Predicated region
        $region45: #{tpu_custom_call.1} parent=43 // pred_check
          %p263 = pneg %p98
        $region46: #{tpu_custom_call.1} parent=43 // pred_check_branch
          %265 = sbr.rel (%p263) target = $region48
        $region47: #{tpu_custom_call.1} parent=43 // pred_region
          %s266 = sand.u32 %s83, 1
          %s267 = scalar_lea.sflag [#allocation4], %s266
          %s268 = sand.u32 %s83, 1
          %s269 = smul.addr %s268, 8
          %s270 = scalar_lea.vmem [#allocation7], %s269
          %271 = dma.done %s267, 128
        $region48: #{tpu_custom_call.1} parent=43 // pred_fallthru
          _
      $region44: #{tpu_custom_call.1} parent=5 // pred_fallthru
        _
    $region6: #{tpu_custom_call.1} parent=1 // loop_footer
      %s21 = sadd.s32 1, %s17
    $region7: #{tpu_custom_call.1} parent=1 // loop_footer_branch
      %16 = sbr.rel target = $region3
    $region8: #{tpu_custom_call.1} parent=1 // loop_exit
      _
    %272 = vsyncpa [#allocation3], 1
    %s273 = scalar_lea.sflag [#allocation3], 1
    %274 = vsyncpa %s273, 1
    %275 = vsyncpa [#allocation6], 1
    %s276 = scalar_lea.sflag [#allocation6], 1
    %277 = vsyncpa %s276, 1
    %278 = vsyncpa [#allocation4], 1
    %s279 = scalar_lea.sflag [#allocation4], 1
    %280 = vsyncpa %s279, 1

</llo_original>
